<compile_context>
chip_gen: v7x
topology: tpu7x:2x2x1
jax: 0.10.0
libtpu: 0.0.40
codegen_flags: <defaults>
</compile_context>

<pallas_src>
import math
from functools import partial

import jax
import jax.numpy as jnp
from jax import lax
from jax.experimental import pallas as pl
from jax.experimental.pallas import tpu as pltpu


# ---------------------------------------------------------------------------
# Row L2 normalization (F.normalize(p=2, dim=1)), bf16 output for the MXU.
# ---------------------------------------------------------------------------
def _row_normalize_kernel(x_ref, o_ref):
    x = x_ref[...].astype(jnp.float32)
    ss = jnp.sum(x * x, axis=1, keepdims=True)
    # 1 / max(||x||, 1e-12) == rsqrt(max(||x||^2, 1e-24)): one EUP op, no divide.
    inv = lax.rsqrt(jnp.maximum(ss, jnp.float32(1e-24)))
    o_ref[...] = (x * inv).astype(o_ref.dtype)


def _pick_row_tile(n, want):
    """Largest power-of-two-ish tile <= want that divides n (fallback: n)."""
    if n <= want:
        return n
    t = want
    while t >= 8:
        if n % t == 0:
            return t
        t //= 2
    return n


def _row_normalize(x, *, row_tile=256, out_dtype=jnp.bfloat16):
    n, e = x.shape
    tr = _pick_row_tile(n, row_tile)
    return pl.pallas_call(
        _row_normalize_kernel,
        out_shape=jax.ShapeDtypeStruct((n, e), out_dtype),
        grid=(n // tr,),
        in_specs=[pl.BlockSpec((tr, e), lambda i: (i, 0))],
        out_specs=pl.BlockSpec((tr, e), lambda i: (i, 0)),
        compiler_params=pltpu.CompilerParams(
            dimension_semantics=("parallel",)),
    )(x)


# ---------------------------------------------------------------------------
# Main loss kernel: grid = (batch tiles [parallel], class tiles [arbitrary]).
# ---------------------------------------------------------------------------
def _lmsl_kernel(xn_ref, wn_ref, wlab_ref, label_ref, out_ref,
                 l_sc, cmt_sc, *, cos_m, sin_m, num_classes):
    j = pl.program_id(1)             # class-tile index (reduction axis, inner)
    nc = pl.num_programs(1)
    tc = wn_ref.shape[0]             # static class-tile size

    xn = xn_ref[...]                 # (tb, E) bf16, already L2-normalized
    lab = label_ref[...]             # (tb, 1) int32

    @pl.when(j == 0)
    def _init():
        l_sc[...] = jnp.zeros_like(l_sc)
        # Target-logit path, hoisted out of the class loop: O(tb*E) f32 work,
        # done exactly once per batch tile.
        t = jnp.sum(xn.astype(jnp.float32) * wlab_ref[...].astype(jnp.float32),
                    axis=1, keepdims=True)                       # (tb, 1)
        sin_t = jnp.sqrt(jnp.maximum(1.0 - t * t, 0.0))          # clamp: no NaN
        cmt_sc[...] = t * cos_m - sin_t * sin_m                  # cos(theta + m)

    wn = wn_ref[...]                 # (tc, E) bf16, already L2-normalized

    # cosine tile: contract E of both operands (NT matmul, native on the MXU),
    # f32 accumulation.
    cos_tile = lax.dot_general(
        xn, wn, dimension_numbers=(((1,), (1,)), ((), ())),
        preferred_element_type=jnp.float32)                      # (tb, tc) f32

    # Label mask via a (1, tc) iota broadcast against the shifted labels:
    # no (tb, tc) int32 temporary.
    col = lax.broadcasted_iota(jnp.int32, (1, tc), 1)            # (1, tc)
    mask = col == (lab - j * tc)                                 # (tb, tc) bool

    # Replace the target-class logit with the margin-adjusted one.
    out_tile = jnp.where(mask, cmt_sc[...], cos_tile)            # (tb, tc)

    # Constant-shift logsumexp: every logit (cos and cos(theta+m)) is in
    # [-1, 1], so a fixed shift of 1.0 is a valid max — no running max needed.
    ex = jnp.exp(out_tile - 1.0)
    if num_classes % tc != 0:   # static: emitted only when padded classes exist
        valid = (j * tc + col) < num_classes
        ex = jnp.where(valid, ex, 0.0)
    l_sc[...] += jnp.sum(ex, axis=1, keepdims=True)

    @pl.when(j == nc - 1)
    def _finalize():
        lse = 1.0 + jnp.log(l_sc[...])
        out_ref[...] = lse - cmt_sc[...]                         # per-example CE


def large_margin_softmax_loss(x, weight, label, *, margin=4,
                              batch_tile=256, class_tile=2048):
    """x: (B, E) f32, weight: (C, E) f32, label: (B,) int -> scalar f32 loss."""
    B, E = x.shape
    C, _ = weight.shape

    # Batch tile: keep >= 2 tiles when possible so v7x's two TensorCores both
    # get work on the 'parallel' axis; tiles must be 8-row aligned or full.
    if B <= batch_tile:
        tb = B // 2 if (B >= 16 and B % 16 == 0) else B
    else:
        assert B % batch_tile == 0, "B must divide the batch tile"
        tb = batch_tile

    # Class tile: pad C up to a tile multiple; padded columns are masked out
    # of the exp-sum inside the kernel.
    tc = C if C <= class_tile else class_tile
    Cp = pl.cdiv(C, tc) * tc
    w_padded = weight if Cp == C else jnp.pad(weight, ((0, Cp - C), (0, 0)))

    # Normalize once outside the grid (weight is reused by every batch tile);
    # bf16 outputs feed the MXU with f32 accumulation.
    xn = _row_normalize(x.astype(jnp.float32), row_tile=256)
    wn = _row_normalize(w_padded.astype(jnp.float32), row_tile=1024)

    # Gather the label rows of the normalized weight once (O(B*E) bytes); the
    # target-logit path is computed from them in f32 inside the kernel.
    label = label.astype(jnp.int32)
    wlab = jnp.take(wn, label, axis=0)                           # (B, E) bf16
    label2d = label.reshape(-1, 1)

    kernel = partial(_lmsl_kernel,
                     cos_m=float(math.cos(margin)),
                     sin_m=float(math.sin(margin)),
                     num_classes=C)

    per_example = pl.pallas_call(
        kernel,
        out_shape=jax.ShapeDtypeStruct((B, 1), jnp.float32),
        grid_spec=pltpu.PrefetchScalarGridSpec(
            num_scalar_prefetch=0,
            grid=(B // tb, Cp // tc),                 # class (reduction) last
            in_specs=[
                pl.BlockSpec((tb, E), lambda i, j: (i, 0)),   # xn
                pl.BlockSpec((tc, E), lambda i, j: (j, 0)),   # wn (streamed)
                pl.BlockSpec((tb, E), lambda i, j: (i, 0)),   # wn[label]
                pl.BlockSpec((tb, 1), lambda i, j: (i, 0)),   # label
            ],
            out_specs=pl.BlockSpec((tb, 1), lambda i, j: (i, 0)),
            scratch_shapes=[pltpu.VMEM((tb, 1), jnp.float32),   # exp-sum
                            pltpu.VMEM((tb, 1), jnp.float32)],  # cmt
        ),
        compiler_params=pltpu.CompilerParams(
            dimension_semantics=("parallel", "arbitrary")),
    )(xn, wn, wlab, label2d)

    # Tiny final reduce outside the kernel keeps the batch axis parallel.
    return jnp.sum(per_example) / jnp.float32(B)


# ---------------------------------------------------------------------------
# Helpers / demo
# ---------------------------------------------------------------------------
def xavier_uniform(key, shape):
    # nn.init.xavier_uniform_ on (class_num, embedding_size):
    # fan_in = embedding_size, fan_out = class_num
    fan_out, fan_in = shape
    bound = math.sqrt(6.0 / (fan_in + fan_out))
    return jax.random.uniform(key, shape, jnp.float32, -bound, bound)


def _reference_loss(x, weight, label, margin=4):
    """Pure-JAX f32 reference of the PyTorch module's forward."""
    xn = x / jnp.maximum(jnp.linalg.norm(x, axis=1, keepdims=True), 1e-12)
    wn = weight / jnp.maximum(jnp.linalg.norm(weight, axis=1, keepdims=True),
                              1e-12)
    cos = xn @ wn.T
    t = cos[jnp.arange(x.shape[0]), label][:, None]
    sin_t = jnp.sqrt(jnp.maximum(1.0 - t * t, 0.0))
    cmt = t * math.cos(margin) - sin_t * math.sin(margin)
    one_hot = jax.nn.one_hot(label, weight.shape[0], dtype=x.dtype)
    out = cos * (1.0 - one_hot) + cmt * one_hot
    logp = jax.nn.log_softmax(out, axis=1)
    return -jnp.mean(jnp.sum(logp * one_hot, axis=1))


if __name__ == "__main__":
    batch = 8
    embedding_size = 32
    class_num = 16

    key = jax.random.PRNGKey(0)
    k_x, k_w, k_l = jax.random.split(key, 3)

    x = jax.random.normal(k_x, (batch, embedding_size), jnp.float32)
    weight = xavier_uniform(k_w, (class_num, embedding_size))
    label = jax.random.randint(k_l, (batch,), 0, class_num, jnp.int32)

    loss = large_margin_softmax_loss(x, weight, label)
    jax.block_until_ready(loss)

    ref = _reference_loss(x, weight, label)
    assert bool(jnp.isfinite(loss)), "loss is not finite"
    # bf16 MXU inputs -> allow a loose tolerance vs. the f32 reference.
    assert abs(float(loss) - float(ref)) < 1e-1, (float(loss), float(ref))

    print("KERNEL_OK")
</pallas_src>

<mosaic_0001>
module attributes {stable_mosaic.version = 11 : i64} {
  func.func @_row_normalize_kernel(%arg0: i32, %arg1: memref<8x32xf32, #tpu.memory_space<vmem>>, %arg2: memref<8x32xbf16, #tpu.memory_space<vmem>>) attributes {dimension_semantics = [#tpu.dimension_semantics<parallel>], iteration_bounds = array<i64: 1>, scalar_prefetch = 0 : i64, scratch_operands = 0 : i64, tpu.core_type = #tpu.core_type<tc>, window_params = [{transform_indices = @transform_0, window_bounds = array<i64: 8, 32>}, {transform_indices = @transform_1, window_bounds = array<i64: 8, 32>}]} {
    %c0 = arith.constant 0 : index
    %c0_0 = arith.constant 0 : index
    %0 = vector.load %arg1[%c0, %c0_0] : memref<8x32xf32, #tpu.memory_space<vmem>>, vector<8x32xf32>
    %1 = arith.mulf %0, %0 : vector<8x32xf32>
    %cst = arith.constant dense<0.000000e+00> : vector<8xf32>
    %2 = vector.multi_reduction <add>, %1, %cst [1] : vector<8x32xf32> to vector<8xf32>
    %3 = vector.shape_cast %2 : vector<8xf32> to vector<8x1xf32>
    %cst_1 = arith.constant 1.000000e-24 : f32
    %4 = vector.broadcast %cst_1 : f32 to vector<8x1xf32>
    %5 = arith.maximumf %3, %4 : vector<8x1xf32>
    %6 = math.rsqrt %5 : vector<8x1xf32>
    %7 = vector.broadcast %6 : vector<8x1xf32> to vector<8x32xf32>
    %8 = arith.mulf %0, %7 : vector<8x32xf32>
    %9 = arith.truncf %8 : vector<8x32xf32> to vector<8x32xbf16>
    %c0_2 = arith.constant 0 : index
    %c0_3 = arith.constant 0 : index
    %10 = vector.load %arg2[%c0_2, %c0_3] : memref<8x32xbf16, #tpu.memory_space<vmem>>, vector<8x32xbf16>
    tpu.vector_store %arg2[%c0_2, %c0_3], %9 {strides = array<i32>} : memref<8x32xbf16, #tpu.memory_space<vmem>>, vector<8x32xbf16>,
    return
  }
  func.func @transform_0(%arg0: i32) -> (i32, i32) {
    %c0_i32 = arith.constant 0 : i32
    %c0_i32_0 = arith.constant 0 : i32
    return %arg0, %c0_i32 : i32, i32
  }
  func.func @transform_1(%arg0: i32) -> (i32, i32) {
    %c0_i32 = arith.constant 0 : i32
    %c0_i32_0 = arith.constant 0 : i32
    return %arg0, %c0_i32 : i32, i32
  }
}

</mosaic_0001>

<llo_original>
// kernel: tpu_custom_call.1
$region0: #{tpu_custom_call.1}
  #allocation0 [shape = 'u32[]', space=smem, size = 0x4, offset = 0x4, fixed_abs, tag = 'smem constant byte address 0x4 - core index']
  #allocation1 [shape = 'u32[144,128]{1,0:T(1,128)}', space=vmem, size = 0x12000, scoped, tag = 'internal scratch']
  %s0 = inlined_call_operand.hbm [shape: f32[8,32], index: 0, kind: input, shape index: {}]
  %s1 = inlined_call_operand.hbm [shape: bf16[8,32], index: 1, kind: output, shape index: {}]
  %s2 = sld [smem:[#allocation0]]
  $region18: #{tpu_custom_call.1} parent=0
    _
  %s4 = ssub.s32 1, %s2
  %s5 = scalar_select 0, %s4, %s2
  $region1: #{tpu_custom_call.1} parent=0
    #allocation2 [shape = 'u8[4096]{0}', space=vmem, size = 0x1000, scoped, tag = 'input window, operand 0, single buffered']
    #allocation3 [shape = 's32[1]{0}', space=sflag, size = 0x4, scoped, tag = 'scoped memory for tpu_custom_call.1']
    #allocation4 [shape = 's32[1]{0}', space=sflag, size = 0x4, scoped, tag = 'scoped memory for tpu_custom_call.1']
    #allocation5 [shape = 'u8[2048]{0}', space=vmem, size = 0x800, scoped, tag = 'output window, operand 0, single buffered']
    %6 = vsyncpa [#allocation3], 0
    %7 = vsyncpa [#allocation4], 0
    // Predicated region
    $region2: #{tpu_custom_call.1} parent=1 // pred_check
      _
    $region3: #{tpu_custom_call.1} parent=1 // pred_check_branch
      %9 = sbr.rel (0) target = $region5
    $region4: #{tpu_custom_call.1} parent=1 // pred_region
      %s11 = ssub.s32 128, 128
      %12 = vsyncadd [#allocation3], %s11
      %s14 = sshll.u32 [#allocation2], 4
      %s15 = int_to_ptr.vmem [resolvable:$true] %s14
      %17 = dma.hbm_to_vmem [thread:$0]  %s0, 128, %s15, [#allocation3]
    $region5: #{tpu_custom_call.1} parent=1 // pred_fallthru
      _
    // Predicated region
    $region6: #{tpu_custom_call.1} parent=1 // pred_check
      _
    $region7: #{tpu_custom_call.1} parent=1 // pred_check_branch
      %19 = sbr.rel (0) target = $region9
    $region8: #{tpu_custom_call.1} parent=1 // pred_region
      %20 = dma.done [#allocation3], 128
    $region9: #{tpu_custom_call.1} parent=1 // pred_fallthru
      _
    %v21 = vld [vmem:[#allocation2] sm:$0xff]
    %v22 = vmul.f32 %v21, %v21
    %vm23 = vcmask 261120
    %v24 = vsel %vm23, %v22, 0.0
    %25 = vadd.xlane.f32.xlu0 %v24
    %v26 = vpop.xlane.xlu0 %25
    %v27 = vmax.f32 %v26, 1e-24
    %v28 = vrsqrt.pop %v27
    %v29 = vmul.f32 %v21, %v28
    %v30 = vpack.c.bf16 %v29, %v29
    %vm31 = vcmask 257024
    %32 = vst.msk [vmem:[#allocation5] sm:$0xf] %vm31, %v30
    // Predicated region
    $region10: #{tpu_custom_call.1} parent=1 // pred_check
      _
    $region11: #{tpu_custom_call.1} parent=1 // pred_check_branch
      %34 = sbr.rel (0) target = $region13
    $region12: #{tpu_custom_call.1} parent=1 // pred_region
      %s36 = ssub.s32 64, 64
      %37 = vsyncadd [#allocation4], %s36
      %s39 = sshll.u32 [#allocation5], 4
      %s40 = int_to_ptr.vmem [resolvable:$true] %s39
      %42 = dma.vmem_to_hbm [thread:$0]  %s40, 64, %s1, [#allocation4]
    $region13: #{tpu_custom_call.1} parent=1 // pred_fallthru
      _
    // Predicated region
    $region14: #{tpu_custom_call.1} parent=1 // pred_check
      _
    $region15: #{tpu_custom_call.1} parent=1 // pred_check_branch
      %44 = sbr.rel (0) target = $region17
    $region16: #{tpu_custom_call.1} parent=1 // pred_region
      %45 = dma.done [#allocation4], 64
    $region17: #{tpu_custom_call.1} parent=1 // pred_fallthru
      _
    %46 = vsyncpa [#allocation3], 1
    %47 = vsyncpa [#allocation4], 1

</llo_original>
